<compile_context>
chip_gen: v5e
topology: v5e:2x2
jax: 0.10.0
libtpu: 0.0.40
codegen_flags: <defaults>
</compile_context>

<pallas_src>
import functools
import math

import jax
import jax.numpy as jnp
from jax import lax
from jax.experimental import pallas as pl
from jax.experimental.pallas import tpu as pltpu


def _focal_partial_sums_kernel(x_ref, y_ref, acc_a_ref, acc_b_ref, *,
                               tile_rows: int, total_elems: int):
    """Accumulates per-cell partial sums of the two BCE-with-logits terms.

    x_ref / y_ref     : (tile_rows, 128) lane-dense tile of the flattened
                        (N*L*C,) element stream, native dtype.
    acc_a_ref         : resident f32 (tile_rows, 128) accumulator of
                        (1 - y) * softplus(x).
    acc_b_ref         : resident f32 (tile_rows, 128) accumulator of
                        y * softplus(-x)   (pos_weight applied in epilogue).
    """
    i = pl.program_id(0)
    num_tiles = pl.num_programs(0)

    @pl.when(i == 0)
    def _():
        acc_a_ref[...] = jnp.zeros_like(acc_a_ref)
        acc_b_ref[...] = jnp.zeros_like(acc_b_ref)

    x = x_ref[...].astype(jnp.float32)
    y = y_ref[...].astype(jnp.float32)

    # Numerically stable softplus(x); softplus(-x) = softplus(x) - x.
    sp = jnp.log1p(jnp.exp(-jnp.abs(x))) + jnp.maximum(x, 0.0)
    t = y * sp
    a = sp - t           # (1 - y) * softplus(x)
    b = t - y * x        # y * softplus(-x)

    # Full (non-last) tiles: plain VPU accumulate, no masking overhead.
    @pl.when(i < num_tiles - 1)
    def _():
        acc_a_ref[...] += a
        acc_b_ref[...] += b

    # Last tile: drop padded elements and the block's out-of-bounds overhang
    # (undefined VMEM, possibly NaN/Inf) with a select — never a multiply.
    @pl.when(i == num_tiles - 1)
    def _():
        rows = lax.broadcasted_iota(jnp.int32, (tile_rows, 128), 0)
        lanes = lax.broadcasted_iota(jnp.int32, (tile_rows, 128), 1)
        idx = (i * tile_rows + rows) * 128 + lanes      # global flat index
        ok = idx < total_elems
        acc_a_ref[...] += jnp.where(ok, a, 0.0)
        acc_b_ref[...] += jnp.where(ok, b, 0.0)


def focal_loss_pallas(x, y, alpha, pos_weight, gamma, *, tile_rows: int = 4096):
    """Forward pass of FocalLoss.  x, y: (N, L, C) float arrays.  Returns f32 scalar.

    Note: the PyTorch module's `reduction` attribute is unused in its forward
    (each per-class BCE is already a scalar mean), so it is not modeled.
    """
    N, L, C = x.shape
    M = N * L
    T = M * C

    # Class of flat element f is f % C; with 128 lanes per row the
    # (row, lane) -> class map repeats every `period` rows.  `base` also
    # covers sublane packing for f32/bf16/int8 block shapes.
    period = C // math.gcd(C, 128)
    base = 32 * period // math.gcd(32, period)          # lcm(32, period)

    R = -(-T // 128)                                     # rows of (R, 128) view
    R_tgt = max(R, base)                                 # tiny inputs: one block

    xf = jnp.ravel(x)
    yf = jnp.ravel(y)
    pad = R_tgt * 128 - T
    if pad:
        # Only wrapper-side copy, and only when N*L*C % 128 != 0 (or the input
        # is tiny).  Padded elements are masked out inside the kernel.
        xf = jnp.pad(xf, (0, pad))
        yf = jnp.pad(yf, (0, pad))
    x2 = xf.reshape(R_tgt, 128)                          # free reshape when pad == 0
    y2 = yf.reshape(R_tgt, 128)

    # Tile rows: a multiple of `base` so every tile starts at a flat offset
    # that is ≡ 0 (mod C) — this keeps the accumulator-cell -> class mapping
    # identical across tiles — and never larger than the array.
    tr = max(base, (int(tile_rows) // base) * base)
    tr = min(tr, (R_tgt // base) * base)
    num_tiles = -(-R_tgt // tr)

    # VMEM budget: 2 inputs x 2 pipeline buffers + 2 resident f32 accumulators
    # (counted double-buffered to be safe) + headroom.  Default tile keeps the
    # total well under v7x's 64 MiB physical VMEM.
    in_bytes = 2 * 2 * tr * 128 * x.dtype.itemsize
    acc_bytes = 2 * 2 * tr * 128 * 4
    vmem_limit = int(min(max(in_bytes + acc_bytes + (8 << 20), 32 << 20), 100 << 20))

    kernel = functools.partial(_focal_partial_sums_kernel,
                               tile_rows=tr, total_elems=T)

    acc_a, acc_b = pl.pallas_call(
        kernel,
        out_shape=(jax.ShapeDtypeStruct((tr, 128), jnp.float32),
                   jax.ShapeDtypeStruct((tr, 128), jnp.float32)),
        grid_spec=pltpu.PrefetchScalarGridSpec(
            num_scalar_prefetch=0,
            grid=(num_tiles,),
            in_specs=[pl.BlockSpec((tr, 128), lambda i: (i, 0)),
                      pl.BlockSpec((tr, 128), lambda i: (i, 0))],
            out_specs=(pl.BlockSpec((tr, 128), lambda i: (0, 0)),
                       pl.BlockSpec((tr, 128), lambda i: (0, 0))),
        ),
        compiler_params=pltpu.CompilerParams(
            dimension_semantics=("arbitrary",),
            vmem_limit_bytes=vmem_limit,
        ),
    )(x2, y2)

    # ---- tiny focal epilogue in plain JAX (O(tr*128*C) + O(C) work) ----
    r_idx = jnp.arange(tr, dtype=jnp.int32)[:, None]
    l_idx = jnp.arange(128, dtype=jnp.int32)[None, :]
    cls = (r_idx * 128 + l_idx) % C                      # cell -> class map
    onehot = cls[None] == jnp.arange(C, dtype=jnp.int32)[:, None, None]
    sum_a = jnp.sum(jnp.where(onehot, acc_a[None], 0.0), axis=(1, 2))   # (C,)
    sum_b = jnp.sum(jnp.where(onehot, acc_b[None], 0.0), axis=(1, 2))   # (C,)

    pw = jnp.asarray(pos_weight, dtype=jnp.float32)
    al = jnp.asarray(alpha, dtype=jnp.float32)
    ga = jnp.asarray(gamma, dtype=jnp.float32)
    bce = (sum_a + pw * sum_b) / jnp.float32(M)          # per-class mean BCE
    p_t = jnp.exp(-bce)
    return jnp.sum(al * jnp.power(1.0 - p_t, ga) * bce).astype(jnp.float32)


def focal_loss_ref(x, y, alpha, pos_weight, gamma):
    """Pure-JAX reference mirroring the PyTorch forward."""
    x = x.astype(jnp.float32)
    y = y.astype(jnp.float32)
    pw = jnp.asarray(pos_weight, dtype=jnp.float32)
    loss = jnp.float32(0.0)
    for c, a in enumerate(alpha):
        xc, yc = x[:, :, c], y[:, :, c]
        t = jnp.log1p(jnp.exp(-jnp.abs(xc)))
        sp_pos = t + jnp.maximum(xc, 0.0)
        sp_neg = t + jnp.maximum(-xc, 0.0)
        bce = jnp.mean(pw[c] * yc * sp_neg + (1.0 - yc) * sp_pos)
        p_t = jnp.exp(-bce)
        loss = loss + a * ((1.0 - p_t) ** gamma[c]) * bce
    return loss


if __name__ == "__main__":
    alpha = [0.5, 0.25, 0.25]
    pos_weight = [1.0, 2.0, 3.0]
    gamma = [2.0, 2.0, 1.0]

    key = jax.random.PRNGKey(0)

    def example(k, n, l, c, dtype=jnp.float32):
        kx, ky = jax.random.split(k)
        xe = (jax.random.normal(kx, (n, l, c), jnp.float32) * 3.0).astype(dtype)
        ye = jax.random.uniform(ky, (n, l, c), jnp.float32).astype(dtype)   # soft targets
        return xe, ye

    cases = [
        # (N, L, C), dtype, tile_rows override, rtol
        ((2, 2048, 3), jnp.float32, None, 5e-4),   # N*L*C % 128 == 0: zero-copy path
        ((2, 500, 3), jnp.float32, None, 5e-4),    # ragged: pad + in-kernel mask
        ((2, 3000, 3), jnp.float32, 96, 5e-4),     # multi-tile + overhanging last block
        ((2, 2048, 3), jnp.bfloat16, None, 2e-2),  # bf16 inputs, f32 accumulation
    ]
    for idx, (shape, dtype, tr_opt, rtol) in enumerate(cases):
        key, sub = jax.random.split(key)
        x, y = example(sub, *shape, dtype=dtype)
        kwargs = {} if tr_opt is None else {"tile_rows": tr_opt}
        got = jax.block_until_ready(
            focal_loss_pallas(x, y, alpha, pos_weight, gamma, **kwargs))
        want = focal_loss_ref(x, y, alpha, pos_weight, gamma)
        assert jnp.allclose(got, want, rtol=rtol, atol=1e-5), (idx, got, want)

    print("KERNEL_OK")
</pallas_src>

<mosaic_0001>
module attributes {stable_mosaic.version = 11 : i64} {
  func.func @_focal_partial_sums_kernel(%arg0: i32, %arg1: memref<96x128xf32, #tpu.memory_space<vmem>>, %arg2: memref<96x128xf32, #tpu.memory_space<vmem>>, %arg3: memref<96x128xf32, #tpu.memory_space<vmem>>, %arg4: memref<96x128xf32, #tpu.memory_space<vmem>>) attributes {dimension_semantics = [#tpu.dimension_semantics<arbitrary>], iteration_bounds = array<i64: 1>, scalar_prefetch = 0 : i64, scratch_operands = 0 : i64, tpu.core_type = #tpu.core_type<tc>, window_params = [{transform_indices = @transform_0, window_bounds = array<i64: 96, 128>}, {transform_indices = @transform_1, window_bounds = array<i64: 96, 128>}, {pipeline_mode = #tpu.pipeline_mode<synchronous>, transform_indices = @transform_2, window_bounds = array<i64: 96, 128>}, {pipeline_mode = #tpu.pipeline_mode<synchronous>, transform_indices = @transform_3, window_bounds = array<i64: 96, 128>}]} {
    %c0_i32 = arith.constant 0 : i32
    %0 = arith.cmpi eq, %arg0, %c0_i32 : i32
    %1 = arith.extui %0 : i1 to i32
    %c0_i32_0 = arith.constant 0 : i32
    %2 = arith.cmpi ne, %1, %c0_i32_0 : i32
    scf.if %2 {
      %cst_9 = arith.constant 0.000000e+00 : f32
      %23 = vector.broadcast %cst_9 : f32 to vector<96x128xf32>
      %c0_10 = arith.constant 0 : index
      %c0_11 = arith.constant 0 : index
      %24 = vector.load %arg3[%c0_10, %c0_11] : memref<96x128xf32, #tpu.memory_space<vmem>>, vector<96x128xf32>
      tpu.vector_store %arg3[%c0_10, %c0_11], %23 {strides = array<i32>} : memref<96x128xf32, #tpu.memory_space<vmem>>, vector<96x128xf32>,
      %cst_12 = arith.constant 0.000000e+00 : f32
      %25 = vector.broadcast %cst_12 : f32 to vector<96x128xf32>
      %c0_13 = arith.constant 0 : index
      %c0_14 = arith.constant 0 : index
      %26 = vector.load %arg4[%c0_13, %c0_14] : memref<96x128xf32, #tpu.memory_space<vmem>>, vector<96x128xf32>
      tpu.vector_store %arg4[%c0_13, %c0_14], %25 {strides = array<i32>} : memref<96x128xf32, #tpu.memory_space<vmem>>, vector<96x128xf32>,
    } else {
    }
    %c0 = arith.constant 0 : index
    %c0_1 = arith.constant 0 : index
    %3 = vector.load %arg1[%c0, %c0_1] : memref<96x128xf32, #tpu.memory_space<vmem>>, vector<96x128xf32>
    %c0_2 = arith.constant 0 : index
    %c0_3 = arith.constant 0 : index
    %4 = vector.load %arg2[%c0_2, %c0_3] : memref<96x128xf32, #tpu.memory_space<vmem>>, vector<96x128xf32>
    %5 = math.absf %3 : vector<96x128xf32>
    %cst = arith.constant 0.000000e+00 : f32
    %6 = vector.broadcast %cst : f32 to vector<96x128xf32>
    %7 = arith.subf %6, %5 : vector<96x128xf32>
    %8 = math.exp %7 : vector<96x128xf32>
    %9 = math.log1p %8 : vector<96x128xf32>
    %cst_4 = arith.constant 0.000000e+00 : f32
    %10 = vector.broadcast %cst_4 : f32 to vector<96x128xf32>
    %11 = arith.maximumf %3, %10 : vector<96x128xf32>
    %12 = arith.addf %9, %11 : vector<96x128xf32>
    %13 = arith.mulf %4, %12 : vector<96x128xf32>
    %14 = arith.subf %12, %13 : vector<96x128xf32>
    %15 = arith.mulf %4, %3 : vector<96x128xf32>
    %16 = arith.subf %13, %15 : vector<96x128xf32>
    %c0_i32_5 = arith.constant 0 : i32
    %17 = arith.cmpi slt, %arg0, %c0_i32_5 : i32
    %18 = arith.extui %17 : i1 to i32
    %c0_i32_6 = arith.constant 0 : i32
    %19 = arith.cmpi ne, %18, %c0_i32_6 : i32
    scf.if %19 {
      %c0_9 = arith.constant 0 : index
      %c0_10 = arith.constant 0 : index
      %23 = vector.load %arg3[%c0_9, %c0_10] : memref<96x128xf32, #tpu.memory_space<vmem>>, vector<96x128xf32>
      %24 = arith.addf %23, %14 : vector<96x128xf32>
      %c0_11 = arith.constant 0 : index
      %c0_12 = arith.constant 0 : index
      %25 = vector.load %arg3[%c0_11, %c0_12] : memref<96x128xf32, #tpu.memory_space<vmem>>, vector<96x128xf32>
      tpu.vector_store %arg3[%c0_11, %c0_12], %24 {strides = array<i32>} : memref<96x128xf32, #tpu.memory_space<vmem>>, vector<96x128xf32>,
      %c0_13 = arith.constant 0 : index
      %c0_14 = arith.constant 0 : index
      %26 = vector.load %arg4[%c0_13, %c0_14] : memref<96x128xf32, #tpu.memory_space<vmem>>, vector<96x128xf32>
      %27 = arith.addf %26, %16 : vector<96x128xf32>
      %c0_15 = arith.constant 0 : index
      %c0_16 = arith.constant 0 : index
      %28 = vector.load %arg4[%c0_15, %c0_16] : memref<96x128xf32, #tpu.memory_space<vmem>>, vector<96x128xf32>
      tpu.vector_store %arg4[%c0_15, %c0_16], %27 {strides = array<i32>} : memref<96x128xf32, #tpu.memory_space<vmem>>, vector<96x128xf32>,
    } else {
    }
    %c0_i32_7 = arith.constant 0 : i32
    %20 = arith.cmpi eq, %arg0, %c0_i32_7 : i32
    %21 = arith.extui %20 : i1 to i32
    %c0_i32_8 = arith.constant 0 : i32
    %22 = arith.cmpi ne, %21, %c0_i32_8 : i32
    scf.if %22 {
      %23 = tpu.iota {dimensions = array<i32: 0>} : vector<96x128xi32>
      %24 = tpu.iota {dimensions = array<i32: 1>} : vector<96x128xi32>
      %c96_i32 = arith.constant 96 : i32
      %25 = arith.muli %arg0, %c96_i32 : i32
      %26 = vector.broadcast %25 : i32 to vector<96x128xi32>
      %27 = arith.addi %26, %23 : vector<96x128xi32>
      %c128_i32 = arith.constant 128 : i32
      %28 = vector.broadcast %c128_i32 : i32 to vector<96x128xi32>
      %29 = arith.muli %27, %28 : vector<96x128xi32>
      %30 = arith.addi %29, %24 : vector<96x128xi32>
      %c12288_i32 = arith.constant 12288 : i32
      %31 = vector.broadcast %c12288_i32 : i32 to vector<96x128xi32>
      %32 = arith.cmpi slt, %30, %31 : vector<96x128xi32>
      %c0_9 = arith.constant 0 : index
      %c0_10 = arith.constant 0 : index
      %33 = vector.load %arg3[%c0_9, %c0_10] : memref<96x128xf32, #tpu.memory_space<vmem>>, vector<96x128xf32>
      %cst_11 = arith.constant 0.000000e+00 : f32
      %34 = vector.broadcast %cst_11 : f32 to vector<96x128xf32>
      %35 = arith.select %32, %14, %34 : vector<96x128xi1>, vector<96x128xf32>
      %36 = arith.addf %33, %35 : vector<96x128xf32>
      %c0_12 = arith.constant 0 : index
      %c0_13 = arith.constant 0 : index
      %37 = vector.load %arg3[%c0_12, %c0_13] : memref<96x128xf32, #tpu.memory_space<vmem>>, vector<96x128xf32>
      tpu.vector_store %arg3[%c0_12, %c0_13], %36 {strides = array<i32>} : memref<96x128xf32, #tpu.memory_space<vmem>>, vector<96x128xf32>,
      %c0_14 = arith.constant 0 : index
      %c0_15 = arith.constant 0 : index
      %38 = vector.load %arg4[%c0_14, %c0_15] : memref<96x128xf32, #tpu.memory_space<vmem>>, vector<96x128xf32>
      %cst_16 = arith.constant 0.000000e+00 : f32
      %39 = vector.broadcast %cst_16 : f32 to vector<96x128xf32>
      %40 = arith.select %32, %16, %39 : vector<96x128xi1>, vector<96x128xf32>
      %41 = arith.addf %38, %40 : vector<96x128xf32>
      %c0_17 = arith.constant 0 : index
      %c0_18 = arith.constant 0 : index
      %42 = vector.load %arg4[%c0_17, %c0_18] : memref<96x128xf32, #tpu.memory_space<vmem>>, vector<96x128xf32>
      tpu.vector_store %arg4[%c0_17, %c0_18], %41 {strides = array<i32>} : memref<96x128xf32, #tpu.memory_space<vmem>>, vector<96x128xf32>,
    } else {
    }
    return
  }
  func.func @transform_0(%arg0: i32) -> (i32, i32) {
    %c0_i32 = arith.constant 0 : i32
    %c0_i32_0 = arith.constant 0 : i32
    return %arg0, %c0_i32 : i32, i32
  }
  func.func @transform_1(%arg0: i32) -> (i32, i32) {
    %c0_i32 = arith.constant 0 : i32
    %c0_i32_0 = arith.constant 0 : i32
    return %arg0, %c0_i32 : i32, i32
  }
  func.func @transform_2(%arg0: i32) -> (i32, i32) {
    %c0_i32 = arith.constant 0 : i32
    %c0_i32_0 = arith.constant 0 : i32
    %c0_i32_1 = arith.constant 0 : i32
    return %c0_i32, %c0_i32_0 : i32, i32
  }
  func.func @transform_3(%arg0: i32) -> (i32, i32) {
    %c0_i32 = arith.constant 0 : i32
    %c0_i32_0 = arith.constant 0 : i32
    %c0_i32_1 = arith.constant 0 : i32
    return %c0_i32, %c0_i32_0 : i32, i32
  }
}

</mosaic_0001>

<llo_original>
// kernel: tpu_custom_call.1
$region0: #{tpu_custom_call.1}
  #allocation0 [shape = 'u32[]', space=smem, size = 0x4, offset = 0x4, fixed_abs, tag = 'smem constant byte address 0x4 - core index']
  #allocation1 [shape = 'u32[72,128]{1,0:T(1,128)}', space=vmem, size = 0x9000, scoped, tag = 'internal scratch']
  %s0 = inlined_call_operand.hbm [shape: f32[96,128], index: 0, kind: input, shape index: {}]
  %s1 = inlined_call_operand.hbm [shape: f32[96,128], index: 1, kind: input, shape index: {}]
  %s2 = inlined_call_operand.hbm [shape: f32[96,128], index: 2, kind: output, shape index: {0}]
  %s3 = inlined_call_operand.hbm [shape: f32[96,128], index: 3, kind: output, shape index: {1}]
  %4 = xla_tuple %s2, %s3
  %s5 = sld [smem:[#allocation0]]
  $region46: #{tpu_custom_call.1} parent=0
    _
  %s7 = ssub.s32 1, %s5
  %s8 = scalar_select 0, %s7, %s5
  $region1: #{tpu_custom_call.1} parent=0
    #allocation2 [shape = 'u8[49152]{0}', space=vmem, size = 0xc000, scoped, tag = 'input window, operand 0, single buffered']
    #allocation3 [shape = 's32[1]{0}', space=sflag, size = 0x4, scoped, tag = 'scoped memory for tpu_custom_call.1']
    #allocation4 [shape = 's32[1]{0}', space=sflag, size = 0x4, scoped, tag = 'scoped memory for tpu_custom_call.1']
    #allocation5 [shape = 'u8[49152]{0}', space=vmem, size = 0xc000, scoped, tag = 'input window, operand 1, single buffered']
    #allocation6 [shape = 's32[1]{0}', space=sflag, size = 0x4, scoped, tag = 'scoped memory for tpu_custom_call.1']
    #allocation7 [shape = 'u8[49152]{0}', space=vmem, size = 0xc000, scoped, tag = 'output window, operand 0, single buffered']
    #allocation8 [shape = 'u8[49152]{0}', space=vmem, size = 0xc000, scoped, tag = 'output window, operand 1, single buffered']
    #allocation9 [shape = 's32[1]{0}', space=sflag, size = 0x4, scoped, tag = 'scoped memory for tpu_custom_call.1']
    %9 = vsyncpa [#allocation3], 0
    %10 = vsyncpa [#allocation6], 0
    %11 = vsyncpa [#allocation4], 0
    %12 = vsyncpa [#allocation9], 0
    // Predicated region
    $region2: #{tpu_custom_call.1} parent=1 // pred_check
      _
    $region3: #{tpu_custom_call.1} parent=1 // pred_check_branch
      %14 = sbr.rel (0) target = $region5
    $region4: #{tpu_custom_call.1} parent=1 // pred_region
      %16 = vsyncadd [#allocation3], 0
      %s17 = sshll.u32 %s0, 4
      %s18 = int_to_ptr.hbm [resolvable:$true] %s17
      %s19 = sshll.u32 [#allocation2], 4
      %s20 = int_to_ptr.vmem [resolvable:$true] %s19
      %25 = dma.hbm_to_vmem [thread:$0]  %s18, 1536, %s20, [#allocation3], 128, 128, 8
    $region5: #{tpu_custom_call.1} parent=1 // pred_fallthru
      _
    // Predicated region
    $region6: #{tpu_custom_call.1} parent=1 // pred_check
      _
    $region7: #{tpu_custom_call.1} parent=1 // pred_check_branch
      %27 = sbr.rel (0) target = $region9
    $region8: #{tpu_custom_call.1} parent=1 // pred_region
      %29 = vsyncadd [#allocation6], 0
      %s30 = sshll.u32 %s1, 4
      %s31 = int_to_ptr.hbm [resolvable:$true] %s30
      %s32 = sshll.u32 [#allocation5], 4
      %s33 = int_to_ptr.vmem [resolvable:$true] %s32
      %38 = dma.hbm_to_vmem [thread:$0]  %s31, 1536, %s33, [#allocation6], 128, 128, 8
    $region9: #{tpu_custom_call.1} parent=1 // pred_fallthru
      _
    // Predicated region
    $region10: #{tpu_custom_call.1} parent=1 // pred_check
      _
    $region11: #{tpu_custom_call.1} parent=1 // pred_check_branch
      %40 = sbr.rel (0) target = $region13
    $region12: #{tpu_custom_call.1} parent=1 // pred_region
      %42 = dma.done [#allocation3], 1536
    $region13: #{tpu_custom_call.1} parent=1 // pred_fallthru
      _
    // Predicated region
    $region14: #{tpu_custom_call.1} parent=1 // pred_check
      _
    $region15: #{tpu_custom_call.1} parent=1 // pred_check_branch
      %44 = sbr.rel (0) target = $region17
    $region16: #{tpu_custom_call.1} parent=1 // pred_region
      %46 = dma.done [#allocation6], 1536
    $region17: #{tpu_custom_call.1} parent=1 // pred_fallthru
      _
    %p47 = scmp.eq.s32.totalorder 0, 0
    // Predicated region
    $region18: #{tpu_custom_call.1} parent=1 // pred_check
      %p48 = pneg %p47
    $region19: #{tpu_custom_call.1} parent=1 // pred_check_branch
      %50 = sbr.rel (%p48) target = $region21
    $region20: #{tpu_custom_call.1} parent=1 // pred_region
      %51 = vst [vmem:[#allocation7] sm:$0xff] 0.0
      %52 = vst [vmem:[#allocation7 + $0x8] sm:$0xff] 0.0
      %53 = vst [vmem:[#allocation7 + $0x10] sm:$0xff] 0.0
      %54 = vst [vmem:[#allocation7 + $0x18] sm:$0xff] 0.0
      %55 = vst [vmem:[#allocation7 + $0x20] sm:$0xff] 0.0
      %56 = vst [vmem:[#allocation7 + $0x28] sm:$0xff] 0.0
      %57 = vst [vmem:[#allocation7 + $0x30] sm:$0xff] 0.0
      %58 = vst [vmem:[#allocation7 + $0x38] sm:$0xff] 0.0
      %59 = vst [vmem:[#allocation7 + $0x40] sm:$0xff] 0.0
      %60 = vst [vmem:[#allocation7 + $0x48] sm:$0xff] 0.0
      %61 = vst [vmem:[#allocation7 + $0x50] sm:$0xff] 0.0
      %62 = vst [vmem:[#allocation7 + $0x58] sm:$0xff] 0.0
      %63 = vst [vmem:[#allocation8] sm:$0xff] 0.0
      %64 = vst [vmem:[#allocation8 + $0x8] sm:$0xff] 0.0
      %65 = vst [vmem:[#allocation8 + $0x10] sm:$0xff] 0.0
      %66 = vst [vmem:[#allocation8 + $0x18] sm:$0xff] 0.0
      %67 = vst [vmem:[#allocation8 + $0x20] sm:$0xff] 0.0
      %68 = vst [vmem:[#allocation8 + $0x28] sm:$0xff] 0.0
      %69 = vst [vmem:[#allocation8 + $0x30] sm:$0xff] 0.0
      %70 = vst [vmem:[#allocation8 + $0x38] sm:$0xff] 0.0
      %71 = vst [vmem:[#allocation8 + $0x40] sm:$0xff] 0.0
      %72 = vst [vmem:[#allocation8 + $0x48] sm:$0xff] 0.0
      %73 = vst [vmem:[#allocation8 + $0x50] sm:$0xff] 0.0
      %74 = vst [vmem:[#allocation8 + $0x58] sm:$0xff] 0.0
    $region21: #{tpu_custom_call.1} parent=1 // pred_fallthru
      _
    %v75 = vld [vmem:[#allocation2] sm:$0xff]
    %v76 = vld [vmem:[#allocation2 + $0x8] sm:$0xff]
    %v77 = vld [vmem:[#allocation2 + $0x10] sm:$0xff]
    %v78 = vld [vmem:[#allocation2 + $0x18] sm:$0xff]
    %v79 = vld [vmem:[#allocation2 + $0x20] sm:$0xff]
    %v80 = vld [vmem:[#allocation2 + $0x28] sm:$0xff]
    %v81 = vld [vmem:[#allocation2 + $0x30] sm:$0xff]
    %v82 = vld [vmem:[#allocation2 + $0x38] sm:$0xff]
    %v83 = vld [vmem:[#allocation2 + $0x40] sm:$0xff]
    %v84 = vld [vmem:[#allocation2 + $0x48] sm:$0xff]
    %v85 = vld [vmem:[#allocation2 + $0x50] sm:$0xff]
    %v86 = vld [vmem:[#allocation2 + $0x58] sm:$0xff]
    %v87 = vld [vmem:[#allocation5] sm:$0xff]
    %v88 = vld [vmem:[#allocation5 + $0x8] sm:$0xff]
    %v89 = vld [vmem:[#allocation5 + $0x10] sm:$0xff]
    %v90 = vld [vmem:[#allocation5 + $0x18] sm:$0xff]
    %v91 = vld [vmem:[#allocation5 + $0x20] sm:$0xff]
    %v92 = vld [vmem:[#allocation5 + $0x28] sm:$0xff]
    %v93 = vld [vmem:[#allocation5 + $0x30] sm:$0xff]
    %v94 = vld [vmem:[#allocation5 + $0x38] sm:$0xff]
    %v95 = vld [vmem:[#allocation5 + $0x40] sm:$0xff]
    %v96 = vld [vmem:[#allocation5 + $0x48] sm:$0xff]
    %v97 = vld [vmem:[#allocation5 + $0x50] sm:$0xff]
    %v98 = vld [vmem:[#allocation5 + $0x58] sm:$0xff]
    %v99 = vand.u32 2147483647, %v75
    %v100 = vand.u32 2147483647, %v76
    %v101 = vand.u32 2147483647, %v77
    %v102 = vand.u32 2147483647, %v78
    %v103 = vand.u32 2147483647, %v79
    %v104 = vand.u32 2147483647, %v80
    %v105 = vand.u32 2147483647, %v81
    %v106 = vand.u32 2147483647, %v82
    %v107 = vand.u32 2147483647, %v83
    %v108 = vand.u32 2147483647, %v84
    %v109 = vand.u32 2147483647, %v85
    %v110 = vand.u32 2147483647, %v86
    %v111 = vsub.f32 0.0, %v99
    %v112 = vsub.f32 0.0, %v100
    %v113 = vsub.f32 0.0, %v101
    %v114 = vsub.f32 0.0, %v102
    %v115 = vsub.f32 0.0, %v103
    %v116 = vsub.f32 0.0, %v104
    %v117 = vsub.f32 0.0, %v105
    %v118 = vsub.f32 0.0, %v106
    %v119 = vsub.f32 0.0, %v107
    %v120 = vsub.f32 0.0, %v108
    %v121 = vsub.f32 0.0, %v109
    %v122 = vsub.f32 0.0, %v110
    %v123 = vmul.f32 %v111, 1.442695
    %v124 = vpow.pop %v123
    %v125 = vmul.f32 %v112, 1.442695
    %v126 = vpow.pop %v125
    %v127 = vmul.f32 %v113, 1.442695
    %v128 = vpow.pop %v127
    %v129 = vmul.f32 %v114, 1.442695
    %v130 = vpow.pop %v129
    %v131 = vmul.f32 %v115, 1.442695
    %v132 = vpow.pop %v131
    %v133 = vmul.f32 %v116, 1.442695
    %v134 = vpow.pop %v133
    %v135 = vmul.f32 %v117, 1.442695
    %v136 = vpow.pop %v135
    %v137 = vmul.f32 %v118, 1.442695
    %v138 = vpow.pop %v137
    %v139 = vmul.f32 %v119, 1.442695
    %v140 = vpow.pop %v139
    %v141 = vmul.f32 %v120, 1.442695
    %v142 = vpow.pop %v141
    %v143 = vmul.f32 %v121, 1.442695
    %v144 = vpow.pop %v143
    %v145 = vmul.f32 %v122, 1.442695
    %v146 = vpow.pop %v145
    %v147 = vadd.f32 %v124, 1.0
    %v148 = vlog2.pop %v147
    %v149 = vmul.f32 %v148, 0.6931472
    %v150 = vmul.f32 -0.5, %v124
    %v151 = vadd.f32 %v150, 1.0
    %v152 = vmul.f32 %v151, %v124
    %v153 = vand.u32 2147483647, %v124
    %vm154 = vcmp.lt.f32.partialorder %v153, 0.0004427343
    %v155 = vsel %vm154, %v152, %v149
    %v156 = vadd.f32 %v126, 1.0
    %v157 = vlog2.pop %v156
    %v158 = vmul.f32 %v157, 0.6931472
    %v159 = vmul.f32 -0.5, %v126
    %v160 = vadd.f32 %v159, 1.0
    %v161 = vmul.f32 %v160, %v126
    %v162 = vand.u32 2147483647, %v126
    %vm163 = vcmp.lt.f32.partialorder %v162, 0.0004427343
    %v164 = vsel %vm163, %v161, %v158
    %v165 = vadd.f32 %v128, 1.0
    %v166 = vlog2.pop %v165
    %v167 = vmul.f32 %v166, 0.6931472
    %v168 = vmul.f32 -0.5, %v128
    %v169 = vadd.f32 %v168, 1.0
    %v170 = vmul.f32 %v169, %v128
    %v171 = vand.u32 2147483647, %v128
    %vm172 = vcmp.lt.f32.partialorder %v171, 0.0004427343
    %v173 = vsel %vm172, %v170, %v167
    %v174 = vadd.f32 %v130, 1.0
    %v175 = vlog2.pop %v174
    %v176 = vmul.f32 %v175, 0.6931472
    %v177 = vmul.f32 -0.5, %v130
    %v178 = vadd.f32 %v177, 1.0
    %v179 = vmul.f32 %v178, %v130
    %v180 = vand.u32 2147483647, %v130
    %vm181 = vcmp.lt.f32.partialorder %v180, 0.0004427343
    %v182 = vsel %vm181, %v179, %v176
    %v183 = vadd.f32 %v132, 1.0
    %v184 = vlog2.pop %v183
    %v185 = vmul.f32 %v184, 0.6931472
    %v186 = vmul.f32 -0.5, %v132
    %v187 = vadd.f32 %v186, 1.0
    %v188 = vmul.f32 %v187, %v132
    %v189 = vand.u32 2147483647, %v132
    %vm190 = vcmp.lt.f32.partialorder %v189, 0.0004427343
    %v191 = vsel %vm190, %v188, %v185
    %v192 = vadd.f32 %v134, 1.0
    %v193 = vlog2.pop %v192
    %v194 = vmul.f32 %v193, 0.6931472
    %v195 = vmul.f32 -0.5, %v134
    %v196 = vadd.f32 %v195, 1.0
    %v197 = vmul.f32 %v196, %v134
    %v198 = vand.u32 2147483647, %v134
    %vm199 = vcmp.lt.f32.partialorder %v198, 0.0004427343
    %v200 = vsel %vm199, %v197, %v194
    %v201 = vadd.f32 %v136, 1.0
    %v202 = vlog2.pop %v201
    %v203 = vmul.f32 %v202, 0.6931472
    %v204 = vmul.f32 -0.5, %v136
    %v205 = vadd.f32 %v204, 1.0
    %v206 = vmul.f32 %v205, %v136
    %v207 = vand.u32 2147483647, %v136
    %vm208 = vcmp.lt.f32.partialorder %v207, 0.0004427343
    %v209 = vsel %vm208, %v206, %v203
    %v210 = vadd.f32 %v138, 1.0
    %v211 = vlog2.pop %v210
    %v212 = vmul.f32 %v211, 0.6931472
    %v213 = vmul.f32 -0.5, %v138
    %v214 = vadd.f32 %v213, 1.0
    %v215 = vmul.f32 %v214, %v138
    %v216 = vand.u32 2147483647, %v138
    %vm217 = vcmp.lt.f32.partialorder %v216, 0.0004427343
    %v218 = vsel %vm217, %v215, %v212
    %v219 = vadd.f32 %v140, 1.0
    %v220 = vlog2.pop %v219
    %v221 = vmul.f32 %v220, 0.6931472
    %v222 = vmul.f32 -0.5, %v140
    %v223 = vadd.f32 %v222, 1.0
    %v224 = vmul.f32 %v223, %v140
    %v225 = vand.u32 2147483647, %v140
    %vm226 = vcmp.lt.f32.partialorder %v225, 0.0004427343
    %v227 = vsel %vm226, %v224, %v221
    %v228 = vadd.f32 %v142, 1.0
    %v229 = vlog2.pop %v228
    %v230 = vmul.f32 %v229, 0.6931472
    %v231 = vmul.f32 -0.5, %v142
    %v232 = vadd.f32 %v231, 1.0
    %v233 = vmul.f32 %v232, %v142
    %v234 = vand.u32 2147483647, %v142
    %vm235 = vcmp.lt.f32.partialorder %v234, 0.0004427343
    %v236 = vsel %vm235, %v233, %v230
    %v237 = vadd.f32 %v144, 1.0
    %v238 = vlog2.pop %v237
    %v239 = vmul.f32 %v238, 0.6931472
    %v240 = vmul.f32 -0.5, %v144
    %v241 = vadd.f32 %v240, 1.0
    %v242 = vmul.f32 %v241, %v144
    %v243 = vand.u32 2147483647, %v144
    %vm244 = vcmp.lt.f32.partialorder %v243, 0.0004427343
    %v245 = vsel %vm244, %v242, %v239
    %v246 = vadd.f32 %v146, 1.0
    %v247 = vlog2.pop %v246
    %v248 = vmul.f32 %v247, 0.6931472
    %v249 = vmul.f32 -0.5, %v146
    %v250 = vadd.f32 %v249, 1.0
    %v251 = vmul.f32 %v250, %v146
    %v252 = vand.u32 2147483647, %v146
    %vm253 = vcmp.lt.f32.partialorder %v252, 0.0004427343
    %v254 = vsel %vm253, %v251, %v248
    %v255 = vmax.f32 %v75, 0.0
    %v256 = vmax.f32 %v76, 0.0
    %v257 = vmax.f32 %v77, 0.0
    %v258 = vmax.f32 %v78, 0.0
    %v259 = vmax.f32 %v79, 0.0
    %v260 = vmax.f32 %v80, 0.0
    %v261 = vmax.f32 %v81, 0.0
    %v262 = vmax.f32 %v82, 0.0
    %v263 = vmax.f32 %v83, 0.0
    %v264 = vmax.f32 %v84, 0.0
    %v265 = vmax.f32 %v85, 0.0
    %v266 = vmax.f32 %v86, 0.0
    %v267 = vadd.f32 %v155, %v255
    %v268 = vadd.f32 %v164, %v256
    %v269 = vadd.f32 %v173, %v257
    %v270 = vadd.f32 %v182, %v258
    %v271 = vadd.f32 %v191, %v259
    %v272 = vadd.f32 %v200, %v260
    %v273 = vadd.f32 %v209, %v261
    %v274 = vadd.f32 %v218, %v262
    %v275 = vadd.f32 %v227, %v263
    %v276 = vadd.f32 %v236, %v264
    %v277 = vadd.f32 %v245, %v265
    %v278 = vadd.f32 %v254, %v266
    %v279 = vmul.f32 %v87, %v267
    %v280 = vmul.f32 %v88, %v268
    %v281 = vmul.f32 %v89, %v269
    %v282 = vmul.f32 %v90, %v270
    %v283 = vmul.f32 %v91, %v271
    %v284 = vmul.f32 %v92, %v272
    %v285 = vmul.f32 %v93, %v273
    %v286 = vmul.f32 %v94, %v274
    %v287 = vmul.f32 %v95, %v275
    %v288 = vmul.f32 %v96, %v276
    %v289 = vmul.f32 %v97, %v277
    %v290 = vmul.f32 %v98, %v278
    %v291 = vsub.f32 %v267, %v279
    %v292 = vsub.f32 %v268, %v280
    %v293 = vsub.f32 %v269, %v281
    %v294 = vsub.f32 %v270, %v282
    %v295 = vsub.f32 %v271, %v283
    %v296 = vsub.f32 %v272, %v284
    %v297 = vsub.f32 %v273, %v285
    %v298 = vsub.f32 %v274, %v286
    %v299 = vsub.f32 %v275, %v287
    %v300 = vsub.f32 %v276, %v288
    %v301 = vsub.f32 %v277, %v289
    %v302 = vsub.f32 %v278, %v290
    %v303 = vmul.f32 %v87, %v75
    %v304 = vmul.f32 %v88, %v76
    %v305 = vmul.f32 %v89, %v77
    %v306 = vmul.f32 %v90, %v78
    %v307 = vmul.f32 %v91, %v79
    %v308 = vmul.f32 %v92, %v80
    %v309 = vmul.f32 %v93, %v81
    %v310 = vmul.f32 %v94, %v82
    %v311 = vmul.f32 %v95, %v83
    %v312 = vmul.f32 %v96, %v84
    %v313 = vmul.f32 %v97, %v85
    %v314 = vmul.f32 %v98, %v86
    %v315 = vsub.f32 %v279, %v303
    %v316 = vsub.f32 %v280, %v304
    %v317 = vsub.f32 %v281, %v305
    %v318 = vsub.f32 %v282, %v306
    %v319 = vsub.f32 %v283, %v307
    %v320 = vsub.f32 %v284, %v308
    %v321 = vsub.f32 %v285, %v309
    %v322 = vsub.f32 %v286, %v310
    %v323 = vsub.f32 %v287, %v311
    %v324 = vsub.f32 %v288, %v312
    %v325 = vsub.f32 %v289, %v313
    %v326 = vsub.f32 %v290, %v314
    %p327 = scmp.lt.s32.totalorder 0, 0
    // Predicated region
    $region22: #{tpu_custom_call.1} parent=1 // pred_check
      %p328 = pneg %p327
    $region23: #{tpu_custom_call.1} parent=1 // pred_check_branch
      %330 = sbr.rel (%p328) target = $region25
    $region24: #{tpu_custom_call.1} parent=1 // pred_region
      %v331 = vld [vmem:[#allocation7] sm:$0xff]
      %v332 = vld [vmem:[#allocation7 + $0x8] sm:$0xff]
      %v333 = vld [vmem:[#allocation7 + $0x10] sm:$0xff]
      %v334 = vld [vmem:[#allocation7 + $0x18] sm:$0xff]
      %v335 = vld [vmem:[#allocation7 + $0x20] sm:$0xff]
      %v336 = vld [vmem:[#allocation7 + $0x28] sm:$0xff]
      %v337 = vld [vmem:[#allocation7 + $0x30] sm:$0xff]
      %v338 = vld [vmem:[#allocation7 + $0x38] sm:$0xff]
      %v339 = vld [vmem:[#allocation7 + $0x40] sm:$0xff]
      %v340 = vld [vmem:[#allocation7 + $0x48] sm:$0xff]
      %v341 = vld [vmem:[#allocation7 + $0x50] sm:$0xff]
      %v342 = vld [vmem:[#allocation7 + $0x58] sm:$0xff]
      %v343 = vadd.f32 %v331, %v291
      %v344 = vadd.f32 %v332, %v292
      %v345 = vadd.f32 %v333, %v293
      %v346 = vadd.f32 %v334, %v294
      %v347 = vadd.f32 %v335, %v295
      %v348 = vadd.f32 %v336, %v296
      %v349 = vadd.f32 %v337, %v297
      %v350 = vadd.f32 %v338, %v298
      %v351 = vadd.f32 %v339, %v299
      %v352 = vadd.f32 %v340, %v300
      %v353 = vadd.f32 %v341, %v301
      %v354 = vadd.f32 %v342, %v302
      %355 = vst [vmem:[#allocation7] sm:$0xff] %v343
      %356 = vst [vmem:[#allocation7 + $0x8] sm:$0xff] %v344
      %357 = vst [vmem:[#allocation7 + $0x10] sm:$0xff] %v345
      %358 = vst [vmem:[#allocation7 + $0x18] sm:$0xff] %v346
      %359 = vst [vmem:[#allocation7 + $0x20] sm:$0xff] %v347
      %360 = vst [vmem:[#allocation7 + $0x28] sm:$0xff] %v348
      %361 = vst [vmem:[#allocation7 + $0x30] sm:$0xff] %v349
      %362 = vst [vmem:[#allocation7 + $0x38] sm:$0xff] %v350
      %363 = vst [vmem:[#allocation7 + $0x40] sm:$0xff] %v351
      %364 = vst [vmem:[#allocation7 + $0x48] sm:$0xff] %v352
      %365 = vst [vmem:[#allocation7 + $0x50] sm:$0xff] %v353
      %366 = vst [vmem:[#allocation7 + $0x58] sm:$0xff] %v354
      %v367 = vld [vmem:[#allocation8] sm:$0xff]
      %v368 = vld [vmem:[#allocation8 + $0x8] sm:$0xff]
      %v369 = vld [vmem:[#allocation8 + $0x10] sm:$0xff]
      %v370 = vld [vmem:[#allocation8 + $0x18] sm:$0xff]
      %v371 = vld [vmem:[#allocation8 + $0x20] sm:$0xff]
      %v372 = vld [vmem:[#allocation8 + $0x28] sm:$0xff]
      %v373 = vld [vmem:[#allocation8 + $0x30] sm:$0xff]
      %v374 = vld [vmem:[#allocation8 + $0x38] sm:$0xff]
      %v375 = vld [vmem:[#allocation8 + $0x40] sm:$0xff]
      %v376 = vld [vmem:[#allocation8 + $0x48] sm:$0xff]
      %v377 = vld [vmem:[#allocation8 + $0x50] sm:$0xff]
      %v378 = vld [vmem:[#allocation8 + $0x58] sm:$0xff]
      %v379 = vadd.f32 %v367, %v315
      %v380 = vadd.f32 %v368, %v316
      %v381 = vadd.f32 %v369, %v317
      %v382 = vadd.f32 %v370, %v318
      %v383 = vadd.f32 %v371, %v319
      %v384 = vadd.f32 %v372, %v320
      %v385 = vadd.f32 %v373, %v321
      %v386 = vadd.f32 %v374, %v322
      %v387 = vadd.f32 %v375, %v323
      %v388 = vadd.f32 %v376, %v324
      %v389 = vadd.f32 %v377, %v325
      %v390 = vadd.f32 %v378, %v326
      %391 = vst [vmem:[#allocation8] sm:$0xff] %v379
      %392 = vst [vmem:[#allocation8 + $0x8] sm:$0xff] %v380
      %393 = vst [vmem:[#allocation8 + $0x10] sm:$0xff] %v381
      %394 = vst [vmem:[#allocation8 + $0x18] sm:$0xff] %v382
      %395 = vst [vmem:[#allocation8 + $0x20] sm:$0xff] %v383
      %396 = vst [vmem:[#allocation8 + $0x28] sm:$0xff] %v384
      %397 = vst [vmem:[#allocation8 + $0x30] sm:$0xff] %v385
      %398 = vst [vmem:[#allocation8 + $0x38] sm:$0xff] %v386
      %399 = vst [vmem:[#allocation8 + $0x40] sm:$0xff] %v387
      %400 = vst [vmem:[#allocation8 + $0x48] sm:$0xff] %v388
      %401 = vst [vmem:[#allocation8 + $0x50] sm:$0xff] %v389
      %402 = vst [vmem:[#allocation8 + $0x58] sm:$0xff] %v390
    $region25: #{tpu_custom_call.1} parent=1 // pred_fallthru
      _
    // Predicated region
    $region26: #{tpu_custom_call.1} parent=1 // pred_check
      %p403 = pneg %p47
    $region27: #{tpu_custom_call.1} parent=1 // pred_check_branch
      %405 = sbr.rel (%p403) target = $region29
    $region28: #{tpu_custom_call.1} parent=1 // pred_region
      %v406 = vlaneseq
      %v407 = vshrl.u32 %v406, 7
      %v408 = vadd.s32 %v407, 8
      %v409 = vadd.s32 %v407, 16
      %v410 = vadd.s32 %v407, 24
      %v411 = vadd.s32 %v407, 32
      %v412 = vadd.s32 %v407, 40
      %v413 = vadd.s32 %v407, 48
      %v414 = vadd.s32 %v407, 56
      %v415 = vadd.s32 %v407, 64
      %v416 = vadd.s32 %v407, 72
      %v417 = vadd.s32 %v407, 80
      %v418 = vadd.s32 %v407, 88
      %v419 = vlaneseq
      %v420 = vand.u32 %v419, 127
      %s421 = smul.u32 0, 96
      %v422 = vstv %s421
      %v423 = vadd.s32 %v422, %v407
      %v424 = vadd.s32 %v422, %v408
      %v425 = vadd.s32 %v422, %v409
      %v426 = vadd.s32 %v422, %v410
      %v427 = vadd.s32 %v422, %v411
      %v428 = vadd.s32 %v422, %v412
      %v429 = vadd.s32 %v422, %v413
      %v430 = vadd.s32 %v422, %v414
      %v431 = vadd.s32 %v422, %v415
      %v432 = vadd.s32 %v422, %v416
      %v433 = vadd.s32 %v422, %v417
      %v434 = vadd.s32 %v422, %v418
      %v435 = vmul.u32 %v423, 128
      %v436 = vmul.u32 %v424, 128
      %v437 = vmul.u32 %v425, 128
      %v438 = vmul.u32 %v426, 128
      %v439 = vmul.u32 %v427, 128
      %v440 = vmul.u32 %v428, 128
      %v441 = vmul.u32 %v429, 128
      %v442 = vmul.u32 %v430, 128
      %v443 = vmul.u32 %v431, 128
      %v444 = vmul.u32 %v432, 128
      %v445 = vmul.u32 %v433, 128
      %v446 = vmul.u32 %v434, 128
      %v447 = vadd.s32 %v435, %v420
      %v448 = vadd.s32 %v436, %v420
      %v449 = vadd.s32 %v437, %v420
      %v450 = vadd.s32 %v438, %v420
      %v451 = vadd.s32 %v439, %v420
      %v452 = vadd.s32 %v440, %v420
      %v453 = vadd.s32 %v441, %v420
      %v454 = vadd.s32 %v442, %v420
      %v455 = vadd.s32 %v443, %v420
      %v456 = vadd.s32 %v444, %v420
      %v457 = vadd.s32 %v445, %v420
      %v458 = vadd.s32 %v446, %v420
      %vm459 = vcmp.lt.s32.totalorder %v447, 12288
      %vm460 = vcmp.lt.s32.totalorder %v448, 12288
      %vm461 = vcmp.lt.s32.totalorder %v449, 12288
      %vm462 = vcmp.lt.s32.totalorder %v450, 12288
      %vm463 = vcmp.lt.s32.totalorder %v451, 12288
      %vm464 = vcmp.lt.s32.totalorder %v452, 12288
      %vm465 = vcmp.lt.s32.totalorder %v453, 12288
      %vm466 = vcmp.lt.s32.totalorder %v454, 12288
      %vm467 = vcmp.lt.s32.totalorder %v455, 12288
      %vm468 = vcmp.lt.s32.totalorder %v456, 12288
      %vm469 = vcmp.lt.s32.totalorder %v457, 12288
      %vm470 = vcmp.lt.s32.totalorder %v458, 12288
      %v471 = vld [vmem:[#allocation7] sm:$0xff]
      %v472 = vld [vmem:[#allocation7 + $0x8] sm:$0xff]
      %v473 = vld [vmem:[#allocation7 + $0x10] sm:$0xff]
      %v474 = vld [vmem:[#allocation7 + $0x18] sm:$0xff]
      %v475 = vld [vmem:[#allocation7 + $0x20] sm:$0xff]
      %v476 = vld [vmem:[#allocation7 + $0x28] sm:$0xff]
      %v477 = vld [vmem:[#allocation7 + $0x30] sm:$0xff]
      %v478 = vld [vmem:[#allocation7 + $0x38] sm:$0xff]
      %v479 = vld [vmem:[#allocation7 + $0x40] sm:$0xff]
      %v480 = vld [vmem:[#allocation7 + $0x48] sm:$0xff]
      %v481 = vld [vmem:[#allocation7 + $0x50] sm:$0xff]
      %v482 = vld [vmem:[#allocation7 + $0x58] sm:$0xff]
      %v483 = vsel %vm459, %v291, 0.0
      %v484 = vsel %vm460, %v292, 0.0
      %v485 = vsel %vm461, %v293, 0.0
      %v486 = vsel %vm462, %v294, 0.0
      %v487 = vsel %vm463, %v295, 0.0
      %v488 = vsel %vm464, %v296, 0.0
      %v489 = vsel %vm465, %v297, 0.0
      %v490 = vsel %vm466, %v298, 0.0
      %v491 = vsel %vm467, %v299, 0.0
      %v492 = vsel %vm468, %v300, 0.0
      %v493 = vsel %vm469, %v301, 0.0
      %v494 = vsel %vm470, %v302, 0.0
      %v495 = vadd.f32 %v471, %v483
      %v496 = vadd.f32 %v472, %v484
      %v497 = vadd.f32 %v473, %v485
      %v498 = vadd.f32 %v474, %v486
      %v499 = vadd.f32 %v475, %v487
      %v500 = vadd.f32 %v476, %v488
      %v501 = vadd.f32 %v477, %v489
      %v502 = vadd.f32 %v478, %v490
      %v503 = vadd.f32 %v479, %v491
      %v504 = vadd.f32 %v480, %v492
      %v505 = vadd.f32 %v481, %v493
      %v506 = vadd.f32 %v482, %v494
      %507 = vst [vmem:[#allocation7] sm:$0xff] %v495
      %508 = vst [vmem:[#allocation7 + $0x8] sm:$0xff] %v496
      %509 = vst [vmem:[#allocation7 + $0x10] sm:$0xff] %v497
      %510 = vst [vmem:[#allocation7 + $0x18] sm:$0xff] %v498
      %511 = vst [vmem:[#allocation7 + $0x20] sm:$0xff] %v499
      %512 = vst [vmem:[#allocation7 + $0x28] sm:$0xff] %v500
      %513 = vst [vmem:[#allocation7 + $0x30] sm:$0xff] %v501
      %514 = vst [vmem:[#allocation7 + $0x38] sm:$0xff] %v502
      %515 = vst [vmem:[#allocation7 + $0x40] sm:$0xff] %v503
      %516 = vst [vmem:[#allocation7 + $0x48] sm:$0xff] %v504
      %517 = vst [vmem:[#allocation7 + $0x50] sm:$0xff] %v505
      %518 = vst [vmem:[#allocation7 + $0x58] sm:$0xff] %v506
      %v519 = vld [vmem:[#allocation8] sm:$0xff]
      %v520 = vld [vmem:[#allocation8 + $0x8] sm:$0xff]
      %v521 = vld [vmem:[#allocation8 + $0x10] sm:$0xff]
      %v522 = vld [vmem:[#allocation8 + $0x18] sm:$0xff]
      %v523 = vld [vmem:[#allocation8 + $0x20] sm:$0xff]
      %v524 = vld [vmem:[#allocation8 + $0x28] sm:$0xff]
      %v525 = vld [vmem:[#allocation8 + $0x30] sm:$0xff]
      %v526 = vld [vmem:[#allocation8 + $0x38] sm:$0xff]
      %v527 = vld [vmem:[#allocation8 + $0x40] sm:$0xff]
      %v528 = vld [vmem:[#allocation8 + $0x48] sm:$0xff]
      %v529 = vld [vmem:[#allocation8 + $0x50] sm:$0xff]
      %v530 = vld [vmem:[#allocation8 + $0x58] sm:$0xff]
      %v531 = vsel %vm459, %v315, 0.0
      %v532 = vsel %vm460, %v316, 0.0
      %v533 = vsel %vm461, %v317, 0.0
      %v534 = vsel %vm462, %v318, 0.0
      %v535 = vsel %vm463, %v319, 0.0
      %v536 = vsel %vm464, %v320, 0.0
      %v537 = vsel %vm465, %v321, 0.0
      %v538 = vsel %vm466, %v322, 0.0
      %v539 = vsel %vm467, %v323, 0.0
      %v540 = vsel %vm468, %v324, 0.0
      %v541 = vsel %vm469, %v325, 0.0
      %v542 = vsel %vm470, %v326, 0.0
      %v543 = vadd.f32 %v519, %v531
      %v544 = vadd.f32 %v520, %v532
      %v545 = vadd.f32 %v521, %v533
      %v546 = vadd.f32 %v522, %v534
      %v547 = vadd.f32 %v523, %v535
      %v548 = vadd.f32 %v524, %v536
      %v549 = vadd.f32 %v525, %v537
      %v550 = vadd.f32 %v526, %v538
      %v551 = vadd.f32 %v527, %v539
      %v552 = vadd.f32 %v528, %v540
      %v553 = vadd.f32 %v529, %v541
      %v554 = vadd.f32 %v530, %v542
      %555 = vst [vmem:[#allocation8] sm:$0xff] %v543
      %556 = vst [vmem:[#allocation8 + $0x8] sm:$0xff] %v544
      %557 = vst [vmem:[#allocation8 + $0x10] sm:$0xff] %v545
      %558 = vst [vmem:[#allocation8 + $0x18] sm:$0xff] %v546
      %559 = vst [vmem:[#allocation8 + $0x20] sm:$0xff] %v547
      %560 = vst [vmem:[#allocation8 + $0x28] sm:$0xff] %v548
      %561 = vst [vmem:[#allocation8 + $0x30] sm:$0xff] %v549
      %562 = vst [vmem:[#allocation8 + $0x38] sm:$0xff] %v550
      %563 = vst [vmem:[#allocation8 + $0x40] sm:$0xff] %v551
      %564 = vst [vmem:[#allocation8 + $0x48] sm:$0xff] %v552
      %565 = vst [vmem:[#allocation8 + $0x50] sm:$0xff] %v553
      %566 = vst [vmem:[#allocation8 + $0x58] sm:$0xff] %v554
    $region29: #{tpu_custom_call.1} parent=1 // pred_fallthru
      _
    // Predicated region
    $region30: #{tpu_custom_call.1} parent=1 // pred_check
      _
    $region31: #{tpu_custom_call.1} parent=1 // pred_check_branch
      %568 = sbr.rel (0) target = $region33
    $region32: #{tpu_custom_call.1} parent=1 // pred_region
      %570 = vsyncadd [#allocation4], 0
      %s571 = sshll.u32 [#allocation7], 4
      %s572 = int_to_ptr.vmem [resolvable:$true] %s571
      %s573 = sshll.u32 %s2, 4
      %s574 = int_to_ptr.hbm [resolvable:$true] %s573
      %579 = dma.vmem_to_hbm [thread:$0]  %s572, 1536, %s574, [#allocation4], 128, 128, 8
    $region33: #{tpu_custom_call.1} parent=1 // pred_fallthru
      _
    // Predicated region
    $region34: #{tpu_custom_call.1} parent=1 // pred_check
      _
    $region35: #{tpu_custom_call.1} parent=1 // pred_check_branch
      %581 = sbr.rel (0) target = $region37
    $region36: #{tpu_custom_call.1} parent=1 // pred_region
      %583 = vsyncadd [#allocation9], 0
      %s584 = sshll.u32 [#allocation8], 4
      %s585 = int_to_ptr.vmem [resolvable:$true] %s584
      %s586 = sshll.u32 %s3, 4
      %s587 = int_to_ptr.hbm [resolvable:$true] %s586
      %592 = dma.vmem_to_hbm [thread:$0]  %s585, 1536, %s587, [#allocation9], 128, 128, 8
    $region37: #{tpu_custom_call.1} parent=1 // pred_fallthru
      _
    // Predicated region
    $region38: #{tpu_custom_call.1} parent=1 // pred_check
      _
    $region39: #{tpu_custom_call.1} parent=1 // pred_check_branch
      %594 = sbr.rel (0) target = $region41
    $region40: #{tpu_custom_call.1} parent=1 // pred_region
      %596 = dma.done [#allocation4], 1536
    $region41: #{tpu_custom_call.1} parent=1 // pred_fallthru
      _
    // Predicated region
    $region42: #{tpu_custom_call.1} parent=1 // pred_check
      _
    $region43: #{tpu_custom_call.1} parent=1 // pred_check_branch
      %598 = sbr.rel (0) target = $region45
    $region44: #{tpu_custom_call.1} parent=1 // pred_region
      %600 = dma.done [#allocation9], 1536
    $region45: #{tpu_custom_call.1} parent=1 // pred_fallthru
      _
    %601 = vsyncpa [#allocation3], 1
    %602 = vsyncpa [#allocation6], 1
    %603 = vsyncpa [#allocation4], 1
    %604 = vsyncpa [#allocation9], 1

</llo_original>
